<compile_context>
chip_gen: v6e
topology: v6e:2x2x1
jax: 0.10.0
libtpu: 0.0.40
codegen_flags: <defaults>
</compile_context>

<pallas_src>
import jax
import jax.numpy as jnp
from jax.experimental import pallas as pl
from jax.experimental.pallas import tpu as pltpu


def _disc_wgan_kernel(x_ref, w1_ref, b1_ref, wq_ref, wk_ref, wv_ref, w2_ref, b2_ref, o_ref):
    tb, s, f = x_ref.shape
    d = w1_ref.shape[1]  # 16

    # ---- Linear(512 -> 16): one large matmul over all TB*S rows (bf16 in, f32 accumulate) ----
    x = x_ref[...].reshape(tb * s, f)                                   # (TB*S, 512) bf16
    h = jnp.dot(x, w1_ref[...], preferred_element_type=jnp.float32) + b1_ref[...]

    # ---- LeakyReLU(0.2) ----
    h = jnp.where(h >= 0.0, h, 0.2 * h)

    # ---- Dropout(0.2): inference-mode identity ----
    # TODO(synk): training-mode dropout (p=0.2) with the TPU PRNG is not implemented.

    # ---- SelfAttention(16) ----
    # wq arrives pre-scaled by 1/sqrt(16), so no per-step score scaling is needed.
    q = jnp.dot(h, wq_ref[...], preferred_element_type=jnp.float32)     # (TB*S, 16)
    k = jnp.dot(h, wk_ref[...], preferred_element_type=jnp.float32)
    v = jnp.dot(h, wv_ref[...], preferred_element_type=jnp.float32)

    hb = h.reshape(tb, s, d)
    qb = q.reshape(tb, s, d)
    kb = k.reshape(tb, s, d)
    vb = v.reshape(tb, s, d)

    # batched q @ k^T without materializing a transpose (contract on the feature dim of both)
    scores = jnp.einsum("bsd,btd->bst", qb, kb, preferred_element_type=jnp.float32)  # (TB, S, S)

    # numerically-stable softmax; normalization via EUP reciprocal (separate issue slot)
    scores = scores - jnp.max(scores, axis=-1, keepdims=True)
    e = jnp.exp(scores)
    attn = e * pl.reciprocal(jnp.sum(e, axis=-1, keepdims=True), approx=True)

    attended = jnp.einsum("bst,btd->bsd", attn, vb, preferred_element_type=jnp.float32)
    sa = hb + attended                                                   # (TB, S, 16)

    # ---- Linear(16 -> 1): matrix-vector, emitted lane-dense as (TB, S) ----
    w2v = w2_ref[0]                                                      # (16,)
    out = jnp.sum(sa * w2v, axis=-1) + b2_ref[0, 0]                      # (TB, S)
    o_ref[...] = out


def _choose_tb(batch, seq):
    """Batch elements per grid step: target ~4K rows per block (~4 MiB bf16 x-tile),
    small enough for v7x's 64 MiB VMEM / default scoped limits, big enough to amortize
    the ~0.35 us per-step overhead and feed the MXU a real M dimension."""
    target_rows = 4096
    tb = max(1, target_rows // max(seq, 1))
    if tb >= batch:
        return batch
    return max(8, (tb // 8) * 8)  # keep the (TB, S) output tile sublane-aligned


def discriminator_wgan_forward(x, params, tb=None):
    """x: (B, S, 512) float32. Returns (B, S, 1) float32."""
    B, S, F = x.shape
    assert F == 512
    w1, b1, wq, wk, wv, w2, b2 = params

    if tb is None:
        tb = _choose_tb(B, S)
    n_blocks = pl.cdiv(B, tb)
    Bp = n_blocks * tb
    if Bp != B:
        x = jnp.pad(x, ((0, Bp - B), (0, 0), (0, 0)))

    # HBM-bandwidth bound on reading x: ship x and w1 as bf16, accumulate in f32 on the MXU.
    x_bf16 = x.astype(jnp.bfloat16)
    w1_bf16 = w1.astype(jnp.bfloat16)
    # Fold the 1/sqrt(16) attention scale into the query projection.
    wq_scaled = wq * (1.0 / jnp.sqrt(jnp.float32(16.0)))
    w2_row = w2.reshape(1, 16)  # (16,1) -> (1,16) row vector for the lane-dense final projection

    full = lambda shape: pl.BlockSpec(shape, lambda b: tuple(0 for _ in shape))

    out = pl.pallas_call(
        _disc_wgan_kernel,
        out_shape=jax.ShapeDtypeStruct((Bp, S), jnp.float32),
        grid_spec=pltpu.PrefetchScalarGridSpec(
            num_scalar_prefetch=0,
            grid=(n_blocks,),
            in_specs=[
                pl.BlockSpec((tb, S, 512), lambda b: (b, 0, 0)),    # x (bf16)
                full((512, 16)),                                    # W1^T (bf16)
                full((1, 16)),                                      # b1
                full((16, 16)),                                     # Wq^T (pre-scaled)
                full((16, 16)),                                     # Wk^T
                full((16, 16)),                                     # Wv^T
                full((1, 16)),                                      # W2 row vector
                pl.BlockSpec(memory_space=pltpu.MemorySpace.SMEM),  # b2 scalar
            ],
            out_specs=pl.BlockSpec((tb, S), lambda b: (b, 0)),      # lane-dense (TB, S)
        ),
        compiler_params=pltpu.CompilerParams(
            dimension_semantics=("parallel",),
        ),
    )(x_bf16, w1_bf16, b1, wq_scaled, wk, wv, w2_row, b2)

    return out[:B].reshape(B, S, 1)


def init_params(key):
    ks = jax.random.split(key, 7)
    scale = 0.05
    # weights stored pre-transposed (in_dim, out_dim) so forward does x @ W
    w1 = scale * jax.random.normal(ks[0], (512, 16), jnp.float32)
    b1 = scale * jax.random.normal(ks[1], (1, 16), jnp.float32)
    wq = scale * jax.random.normal(ks[2], (16, 16), jnp.float32)
    wk = scale * jax.random.normal(ks[3], (16, 16), jnp.float32)
    wv = scale * jax.random.normal(ks[4], (16, 16), jnp.float32)
    w2 = scale * jax.random.normal(ks[5], (16, 1), jnp.float32)
    b2 = scale * jax.random.normal(ks[6], (1, 1), jnp.float32)
    return (w1, b1, wq, wk, wv, w2, b2)


def _reference(x, params):
    """Pure-JAX f32 reference of the PyTorch forward (eval mode)."""
    w1, b1, wq, wk, wv, w2, b2 = params
    h = x @ w1 + b1
    h = jnp.where(h >= 0.0, h, 0.2 * h)
    q, k, v = h @ wq, h @ wk, h @ wv
    scores = jnp.einsum("bsd,btd->bst", q, k) / jnp.sqrt(jnp.float32(16.0))
    attn = jax.nn.softmax(scores, axis=-1)
    sa = h + jnp.einsum("bst,btd->bsd", attn, v)
    return sa @ w2 + b2


if __name__ == "__main__":
    key = jax.random.PRNGKey(0)
    k_x, k_x2, k_p = jax.random.split(key, 3)
    params = init_params(k_p)

    # small demo shape
    B, S = 2, 8
    x = jax.random.normal(k_x, (B, S, 512), jnp.float32)
    out = jax.block_until_ready(discriminator_wgan_forward(x, params))
    ref = _reference(x, params)
    assert out.shape == (B, S, 1)
    assert jnp.allclose(out, ref, atol=2e-2, rtol=2e-2), float(jnp.max(jnp.abs(out - ref)))

    # exercise the multi-block / batch-padding path (B=20 not divisible by tb=8 -> pad to 24)
    B2 = 20
    x2 = jax.random.normal(k_x2, (B2, S, 512), jnp.float32)
    out2 = jax.block_until_ready(discriminator_wgan_forward(x2, params, tb=8))
    ref2 = _reference(x2, params)
    assert out2.shape == (B2, S, 1)
    assert jnp.allclose(out2, ref2, atol=2e-2, rtol=2e-2), float(jnp.max(jnp.abs(out2 - ref2)))

    print("KERNEL_OK")
</pallas_src>

<mosaic_0001>
module attributes {stable_mosaic.version = 11 : i64} {
  func.func @_disc_wgan_kernel(%arg0: i32, %arg1: memref<2x8x512xbf16, #tpu.memory_space<vmem>>, %arg2: memref<512x16xbf16, #tpu.memory_space<vmem>>, %arg3: memref<1x16xf32, #tpu.memory_space<vmem>>, %arg4: memref<16x16xf32, #tpu.memory_space<vmem>>, %arg5: memref<16x16xf32, #tpu.memory_space<vmem>>, %arg6: memref<16x16xf32, #tpu.memory_space<vmem>>, %arg7: memref<1x16xf32, #tpu.memory_space<vmem>>, %arg8: memref<1x1xf32, #tpu.memory_space<smem>>, %arg9: memref<2x8xf32, #tpu.memory_space<vmem>>) attributes {dimension_semantics = [#tpu.dimension_semantics<parallel>], iteration_bounds = array<i64: 1>, scalar_prefetch = 0 : i64, scratch_operands = 0 : i64, tpu.core_type = #tpu.core_type<tc>, window_params = [{transform_indices = @transform_0, window_bounds = array<i64: 2, 8, 512>}, {pipeline_mode = #tpu.pipeline_mode<synchronous>, transform_indices = @transform_1, window_bounds = array<i64: 512, 16>}, {pipeline_mode = #tpu.pipeline_mode<synchronous>, transform_indices = @transform_2, window_bounds = array<i64: 1, 16>}, {pipeline_mode = #tpu.pipeline_mode<synchronous>, transform_indices = @transform_3, window_bounds = array<i64: 16, 16>}, {pipeline_mode = #tpu.pipeline_mode<synchronous>, transform_indices = @transform_4, window_bounds = array<i64: 16, 16>}, {pipeline_mode = #tpu.pipeline_mode<synchronous>, transform_indices = @transform_5, window_bounds = array<i64: 16, 16>}, {pipeline_mode = #tpu.pipeline_mode<synchronous>, transform_indices = @transform_6, window_bounds = array<i64: 1, 16>}, {transform_indices = @transform_7, window_bounds = array<i64: 1, 1>}, {transform_indices = @transform_8, window_bounds = array<i64: 2, 8>}]} {
    %c0 = arith.constant 0 : index
    %c0_0 = arith.constant 0 : index
    %c0_1 = arith.constant 0 : index
    %0 = vector.load %arg1[%c0, %c0_0, %c0_1] : memref<2x8x512xbf16, #tpu.memory_space<vmem>>, vector<2x8x512xbf16>
    %1 = vector.shape_cast %0 : vector<2x8x512xbf16> to vector<16x512xbf16>
    %c0_2 = arith.constant 0 : index
    %c0_3 = arith.constant 0 : index
    %2 = vector.load %arg2[%c0_2, %c0_3] : memref<512x16xbf16, #tpu.memory_space<vmem>>, vector<512x16xbf16>
    %cst = arith.constant dense<0.000000e+00> : vector<16x16xf32>
    %3 = tpu.matmul %1, %2, %cst {dimension_numbers = #tpu.dot_dimension_numbers<[1], [0], [0], [1], [0, 0, 1, 1], [], []>} : vector<16x512xbf16>, vector<512x16xbf16>, vector<16x16xf32> -> vector<16x16xf32>
    %c0_4 = arith.constant 0 : index
    %c0_5 = arith.constant 0 : index
    %4 = vector.load %arg3[%c0_4, %c0_5] : memref<1x16xf32, #tpu.memory_space<vmem>>, vector<1x16xf32>
    %5 = vector.broadcast %4 : vector<1x16xf32> to vector<16x16xf32>
    %6 = arith.addf %3, %5 : vector<16x16xf32>
    %cst_6 = arith.constant 0.000000e+00 : f32
    %7 = vector.broadcast %cst_6 : f32 to vector<16x16xf32>
    %8 = arith.cmpf oge, %6, %7 : vector<16x16xf32>
    %cst_7 = arith.constant 2.000000e-01 : f32
    %9 = vector.broadcast %cst_7 : f32 to vector<16x16xf32>
    %10 = arith.mulf %9, %6 : vector<16x16xf32>
    %11 = arith.select %8, %6, %10 : vector<16x16xi1>, vector<16x16xf32>
    %c0_8 = arith.constant 0 : index
    %c0_9 = arith.constant 0 : index
    %12 = vector.load %arg4[%c0_8, %c0_9] : memref<16x16xf32, #tpu.memory_space<vmem>>, vector<16x16xf32>
    %cst_10 = arith.constant dense<0.000000e+00> : vector<16x16xf32>
    %13 = tpu.matmul %11, %12, %cst_10 {dimension_numbers = #tpu.dot_dimension_numbers<[1], [0], [0], [1], [0, 0, 1, 1], [], []>} : vector<16x16xf32>, vector<16x16xf32>, vector<16x16xf32> -> vector<16x16xf32>
    %c0_11 = arith.constant 0 : index
    %c0_12 = arith.constant 0 : index
    %14 = vector.load %arg5[%c0_11, %c0_12] : memref<16x16xf32, #tpu.memory_space<vmem>>, vector<16x16xf32>
    %cst_13 = arith.constant dense<0.000000e+00> : vector<16x16xf32>
    %15 = tpu.matmul %11, %14, %cst_13 {dimension_numbers = #tpu.dot_dimension_numbers<[1], [0], [0], [1], [0, 0, 1, 1], [], []>} : vector<16x16xf32>, vector<16x16xf32>, vector<16x16xf32> -> vector<16x16xf32>
    %c0_14 = arith.constant 0 : index
    %c0_15 = arith.constant 0 : index
    %16 = vector.load %arg6[%c0_14, %c0_15] : memref<16x16xf32, #tpu.memory_space<vmem>>, vector<16x16xf32>
    %cst_16 = arith.constant dense<0.000000e+00> : vector<16x16xf32>
    %17 = tpu.matmul %11, %16, %cst_16 {dimension_numbers = #tpu.dot_dimension_numbers<[1], [0], [0], [1], [0, 0, 1, 1], [], []>} : vector<16x16xf32>, vector<16x16xf32>, vector<16x16xf32> -> vector<16x16xf32>
    %18 = vector.shape_cast %11 : vector<16x16xf32> to vector<2x8x16xf32>
    %19 = vector.shape_cast %13 : vector<16x16xf32> to vector<2x8x16xf32>
    %20 = vector.shape_cast %15 : vector<16x16xf32> to vector<2x8x16xf32>
    %21 = vector.shape_cast %17 : vector<16x16xf32> to vector<2x8x16xf32>
    "tpu.trace_start"() <{level = 10 : i32, message = "bsd,btd->bst"}> : () -> ()
    %cst_17 = arith.constant dense<0.000000e+00> : vector<2x8x8xf32>
    %22 = tpu.matmul %19, %20, %cst_17 {dimension_numbers = #tpu.dot_dimension_numbers<[2], [2], [1], [1], [0, 0, 0, 1, 1, 1], [0], [0]>} : vector<2x8x16xf32>, vector<2x8x16xf32>, vector<2x8x8xf32> -> vector<2x8x8xf32>
    "tpu.trace_stop"() : () -> ()
    %cst_18 = arith.constant dense<0xFF800000> : vector<2x8xf32>
    %23 = vector.multi_reduction <maximumf>, %22, %cst_18 [2] : vector<2x8x8xf32> to vector<2x8xf32>
    %24 = vector.shape_cast %23 : vector<2x8xf32> to vector<2x8x1xf32>
    %25 = vector.broadcast %24 : vector<2x8x1xf32> to vector<2x8x8xf32>
    %26 = arith.subf %22, %25 : vector<2x8x8xf32>
    %27 = math.exp %26 : vector<2x8x8xf32>
    %cst_19 = arith.constant dense<0.000000e+00> : vector<2x8xf32>
    %28 = vector.multi_reduction <add>, %27, %cst_19 [2] : vector<2x8x8xf32> to vector<2x8xf32>
    %29 = vector.shape_cast %28 : vector<2x8xf32> to vector<2x8x1xf32>
    %30 = tpu.reciprocal %29 {approx = true} : vector<2x8x1xf32> -> vector<2x8x1xf32>
    %31 = vector.broadcast %30 : vector<2x8x1xf32> to vector<2x8x8xf32>
    %32 = arith.mulf %27, %31 : vector<2x8x8xf32>
    "tpu.trace_start"() <{level = 10 : i32, message = "bst,btd->bsd"}> : () -> ()
    %cst_20 = arith.constant dense<0.000000e+00> : vector<2x8x16xf32>
    %33 = tpu.matmul %32, %21, %cst_20 {dimension_numbers = #tpu.dot_dimension_numbers<[2], [1], [1], [2], [0, 0, 0, 1, 1, 2], [0], [0]>} : vector<2x8x8xf32>, vector<2x8x16xf32>, vector<2x8x16xf32> -> vector<2x8x16xf32>
    "tpu.trace_stop"() : () -> ()
    %34 = arith.addf %18, %33 : vector<2x8x16xf32>
    %c0_21 = arith.constant 0 : index
    %c0_22 = arith.constant 0 : index
    %35 = vector.load %arg7[%c0_21, %c0_22] : memref<1x16xf32, #tpu.memory_space<vmem>>, vector<1x16xf32>
    %36 = vector.shape_cast %35 : vector<1x16xf32> to vector<16xf32>
    %37 = vector.shape_cast %36 : vector<16xf32> to vector<1x1x16xf32>
    %38 = vector.broadcast %37 : vector<1x1x16xf32> to vector<2x8x16xf32>
    %39 = arith.mulf %34, %38 : vector<2x8x16xf32>
    %cst_23 = arith.constant dense<0.000000e+00> : vector<2x8xf32>
    %40 = vector.multi_reduction <add>, %39, %cst_23 [2] : vector<2x8x16xf32> to vector<2x8xf32>
    %c0_24 = arith.constant 0 : index
    %c0_25 = arith.constant 0 : index
    %41 = memref.load %arg8[%c0_24, %c0_25] : memref<1x1xf32, #tpu.memory_space<smem>>
    %42 = vector.broadcast %41 : f32 to vector<2x8xf32>
    %43 = arith.addf %40, %42 : vector<2x8xf32>
    %c0_26 = arith.constant 0 : index
    %c0_27 = arith.constant 0 : index
    %44 = vector.load %arg9[%c0_26, %c0_27] : memref<2x8xf32, #tpu.memory_space<vmem>>, vector<2x8xf32>
    tpu.vector_store %arg9[%c0_26, %c0_27], %43 {strides = array<i32>} : memref<2x8xf32, #tpu.memory_space<vmem>>, vector<2x8xf32>,
    return
  }
  func.func @transform_0(%arg0: i32) -> (i32, i32, i32) {
    %c0_i32 = arith.constant 0 : i32
    %c0_i32_0 = arith.constant 0 : i32
    %c0_i32_1 = arith.constant 0 : i32
    return %arg0, %c0_i32, %c0_i32_0 : i32, i32, i32
  }
  func.func @transform_1(%arg0: i32) -> (i32, i32) {
    %c0_i32 = arith.constant 0 : i32
    %c0_i32_0 = arith.constant 0 : i32
    %c0_i32_1 = arith.constant 0 : i32
    return %c0_i32, %c0_i32_0 : i32, i32
  }
  func.func @transform_2(%arg0: i32) -> (i32, i32) {
    %c0_i32 = arith.constant 0 : i32
    %c0_i32_0 = arith.constant 0 : i32
    %c0_i32_1 = arith.constant 0 : i32
    return %c0_i32, %c0_i32_0 : i32, i32
  }
  func.func @transform_3(%arg0: i32) -> (i32, i32) {
    %c0_i32 = arith.constant 0 : i32
    %c0_i32_0 = arith.constant 0 : i32
    %c0_i32_1 = arith.constant 0 : i32
    return %c0_i32, %c0_i32_0 : i32, i32
  }
  func.func @transform_4(%arg0: i32) -> (i32, i32) {
    %c0_i32 = arith.constant 0 : i32
    %c0_i32_0 = arith.constant 0 : i32
    %c0_i32_1 = arith.constant 0 : i32
    return %c0_i32, %c0_i32_0 : i32, i32
  }
  func.func @transform_5(%arg0: i32) -> (i32, i32) {
    %c0_i32 = arith.constant 0 : i32
    %c0_i32_0 = arith.constant 0 : i32
    %c0_i32_1 = arith.constant 0 : i32
    return %c0_i32, %c0_i32_0 : i32, i32
  }
  func.func @transform_6(%arg0: i32) -> (i32, i32) {
    %c0_i32 = arith.constant 0 : i32
    %c0_i32_0 = arith.constant 0 : i32
    %c0_i32_1 = arith.constant 0 : i32
    return %c0_i32, %c0_i32_0 : i32, i32
  }
  func.func @transform_7(%arg0: i32) -> (i32, i32) {
    %c0_i32 = arith.constant 0 : i32
    %c0_i32_0 = arith.constant 0 : i32
    %c0_i32_1 = arith.constant 0 : i32
    return %c0_i32, %c0_i32_0 : i32, i32
  }
  func.func @transform_8(%arg0: i32) -> (i32, i32) {
    %c0_i32 = arith.constant 0 : i32
    %c0_i32_0 = arith.constant 0 : i32
    return %arg0, %c0_i32 : i32, i32
  }
}

</mosaic_0001>

<llo_original>
// kernel: tpu_custom_call.1
$region0: #{tpu_custom_call.1}
  #allocation0 [shape = 'u32[]', space=smem, size = 0x4, offset = 0x4, fixed_abs, tag = 'smem constant byte address 0x4 - core index']
  #allocation1 [shape = 'u32[144,128]{1,0:T(1,128)}', space=vmem, size = 0x12000, scoped, tag = 'internal scratch']
  #allocation2 [shape = 'f32[1,1]{1,0:T(1,128)S(6)}', space=smem, size = 0x200, scoped, tag = 'scoped memory for tpu_custom_call.1']
  %s0 = inlined_call_operand.vmem [shape: bf16[2,8,512], index: 0, kind: input, shape index: {}]
  %s1 = inlined_call_operand.vmem [shape: bf16[512,16], index: 1, kind: input, shape index: {}]
  %s2 = inlined_call_operand.vmem [shape: f32[1,16], index: 2, kind: input, shape index: {}]
  %s3 = inlined_call_operand.vmem [shape: f32[16,16], index: 3, kind: input, shape index: {}]
  %s4 = inlined_call_operand.vmem [shape: f32[16,16], index: 4, kind: input, shape index: {}]
  %s5 = inlined_call_operand.vmem [shape: f32[16,16], index: 5, kind: input, shape index: {}]
  %s6 = inlined_call_operand.vmem [shape: f32[1,16], index: 6, kind: input, shape index: {}]
  %s7 = inlined_call_operand.<no memory space> [shape: f32[1,1], index: 7, kind: input, shape index: {}]
  %s8 = inlined_call_operand.hbm [shape: f32[2,8], index: 8, kind: output, shape index: {}]
  %s9 = sld [smem:[#allocation0]]
  $region42: #{tpu_custom_call.1} parent=0
    _
  %s11 = ssub.s32 1, %s9
  %s12 = scalar_select 0, %s11, %s9
  %13 = sst [smem:[#allocation2]] %s7
  $region1: #{tpu_custom_call.1} parent=0
    #allocation3 [shape = 'u8[1024]{0}', space=vmem, size = 0x400, scoped, tag = 'output window, operand 0, single buffered']
    #allocation4 [shape = 's32[1]{0}', space=sflag, size = 0x4, scoped, tag = 'scoped memory for tpu_custom_call.1']
    %14 = vsyncpa [#allocation4], 0
    // Predicated region
    $region2: #{tpu_custom_call.1} parent=1 // pred_check
      _
    $region3: #{tpu_custom_call.1} parent=1 // pred_check_branch
      %16 = sbr.rel (0) target = $region5
    $region4: #{tpu_custom_call.1} parent=1 // pred_region
      _
    $region5: #{tpu_custom_call.1} parent=1 // pred_fallthru
      _
    // Predicated region
    $region6: #{tpu_custom_call.1} parent=1 // pred_check
      _
    $region7: #{tpu_custom_call.1} parent=1 // pred_check_branch
      %18 = sbr.rel (0) target = $region9
    $region8: #{tpu_custom_call.1} parent=1 // pred_region
      _
    $region9: #{tpu_custom_call.1} parent=1 // pred_fallthru
      _
    // Predicated region
    $region10: #{tpu_custom_call.1} parent=1 // pred_check
      _
    $region11: #{tpu_custom_call.1} parent=1 // pred_check_branch
      %20 = sbr.rel (0) target = $region13
    $region12: #{tpu_custom_call.1} parent=1 // pred_region
      _
    $region13: #{tpu_custom_call.1} parent=1 // pred_fallthru
      _
    // Predicated region
    $region14: #{tpu_custom_call.1} parent=1 // pred_check
      _
    $region15: #{tpu_custom_call.1} parent=1 // pred_check_branch
      %22 = sbr.rel (0) target = $region17
    $region16: #{tpu_custom_call.1} parent=1 // pred_region
      _
    $region17: #{tpu_custom_call.1} parent=1 // pred_fallthru
      _
    // Predicated region
    $region18: #{tpu_custom_call.1} parent=1 // pred_check
      _
    $region19: #{tpu_custom_call.1} parent=1 // pred_check_branch
      %24 = sbr.rel (0) target = $region21
    $region20: #{tpu_custom_call.1} parent=1 // pred_region
      _
    $region21: #{tpu_custom_call.1} parent=1 // pred_fallthru
      _
    // Predicated region
    $region22: #{tpu_custom_call.1} parent=1 // pred_check
      _
    $region23: #{tpu_custom_call.1} parent=1 // pred_check_branch
      %26 = sbr.rel (0) target = $region25
    $region24: #{tpu_custom_call.1} parent=1 // pred_region
      _
    $region25: #{tpu_custom_call.1} parent=1 // pred_fallthru
      _
    // Predicated region
    $region26: #{tpu_custom_call.1} parent=1 // pred_check
      _
    $region27: #{tpu_custom_call.1} parent=1 // pred_check_branch
      %28 = sbr.rel (0) target = $region29
    $region28: #{tpu_custom_call.1} parent=1 // pred_region
      _
    $region29: #{tpu_custom_call.1} parent=1 // pred_fallthru
      _
    // Predicated region
    $region30: #{tpu_custom_call.1} parent=1 // pred_check
      _
    $region31: #{tpu_custom_call.1} parent=1 // pred_check_branch
      %30 = sbr.rel (0) target = $region33
    $region32: #{tpu_custom_call.1} parent=1 // pred_region
      _
    $region33: #{tpu_custom_call.1} parent=1 // pred_fallthru
      _
    %v32 = vld [vmem:[%s0] sm:$0xff]
    %v33 = vld [vmem:[%s0 + $0x8] sm:$0xff]
    %v34 = vld [vmem:[%s0 + $0x10] sm:$0xff]
    %v35 = vld [vmem:[%s0 + $0x18] sm:$0xff]
    %v36 = vld [vmem:[%s1] sm:$0xf]
    %v37 = vld [vmem:[%s1 + $0x4] sm:$0xf]
    %v38 = vld [vmem:[%s1 + $0x8] sm:$0xf]
    %v39 = vld [vmem:[%s1 + $0xc] sm:$0xf]
    %v40 = vld [vmem:[%s1 + $0x10] sm:$0xf]
    %v41 = vld [vmem:[%s1 + $0x14] sm:$0xf]
    %v42 = vld [vmem:[%s1 + $0x18] sm:$0xf]
    %v43 = vld [vmem:[%s1 + $0x1c] sm:$0xf]
    %v44 = vld [vmem:[%s1 + $0x20] sm:$0xf]
    %v45 = vld [vmem:[%s1 + $0x24] sm:$0xf]
    %v46 = vld [vmem:[%s1 + $0x28] sm:$0xf]
    %v47 = vld [vmem:[%s1 + $0x2c] sm:$0xf]
    %v48 = vld [vmem:[%s1 + $0x30] sm:$0xf]
    %v49 = vld [vmem:[%s1 + $0x34] sm:$0xf]
    %v50 = vld [vmem:[%s1 + $0x38] sm:$0xf]
    %v51 = vld [vmem:[%s1 + $0x3c] sm:$0xf]
    %v52 = vld [vmem:[%s1 + $0x40] sm:$0xf]
    %v53 = vld [vmem:[%s1 + $0x44] sm:$0xf]
    %v54 = vld [vmem:[%s1 + $0x48] sm:$0xf]
    %v55 = vld [vmem:[%s1 + $0x4c] sm:$0xf]
    %v56 = vld [vmem:[%s1 + $0x50] sm:$0xf]
    %v57 = vld [vmem:[%s1 + $0x54] sm:$0xf]
    %v58 = vld [vmem:[%s1 + $0x58] sm:$0xf]
    %v59 = vld [vmem:[%s1 + $0x5c] sm:$0xf]
    %v60 = vld [vmem:[%s1 + $0x60] sm:$0xf]
    %v61 = vld [vmem:[%s1 + $0x64] sm:$0xf]
    %v62 = vld [vmem:[%s1 + $0x68] sm:$0xf]
    %v63 = vld [vmem:[%s1 + $0x6c] sm:$0xf]
    %v64 = vld [vmem:[%s1 + $0x70] sm:$0xf]
    %v65 = vld [vmem:[%s1 + $0x74] sm:$0xf]
    %v66 = vld [vmem:[%s1 + $0x78] sm:$0xf]
    %v67 = vld [vmem:[%s1 + $0x7c] sm:$0xf]
    %v68 = vld [vmem:[%s1 + $0x80] sm:$0xf]
    %v69 = vld [vmem:[%s1 + $0x84] sm:$0xf]
    %v70 = vld [vmem:[%s1 + $0x88] sm:$0xf]
    %v71 = vld [vmem:[%s1 + $0x8c] sm:$0xf]
    %v72 = vld [vmem:[%s1 + $0x90] sm:$0xf]
    %v73 = vld [vmem:[%s1 + $0x94] sm:$0xf]
    %v74 = vld [vmem:[%s1 + $0x98] sm:$0xf]
    %v75 = vld [vmem:[%s1 + $0x9c] sm:$0xf]
    %v76 = vld [vmem:[%s1 + $0xa0] sm:$0xf]
    %v77 = vld [vmem:[%s1 + $0xa4] sm:$0xf]
    %v78 = vld [vmem:[%s1 + $0xa8] sm:$0xf]
    %v79 = vld [vmem:[%s1 + $0xac] sm:$0xf]
    %v80 = vld [vmem:[%s1 + $0xb0] sm:$0xf]
    %v81 = vld [vmem:[%s1 + $0xb4] sm:$0xf]
    %v82 = vld [vmem:[%s1 + $0xb8] sm:$0xf]
    %v83 = vld [vmem:[%s1 + $0xbc] sm:$0xf]
    %v84 = vld [vmem:[%s1 + $0xc0] sm:$0xf]
    %v85 = vld [vmem:[%s1 + $0xc4] sm:$0xf]
    %v86 = vld [vmem:[%s1 + $0xc8] sm:$0xf]
    %v87 = vld [vmem:[%s1 + $0xcc] sm:$0xf]
    %v88 = vld [vmem:[%s1 + $0xd0] sm:$0xf]
    %v89 = vld [vmem:[%s1 + $0xd4] sm:$0xf]
    %v90 = vld [vmem:[%s1 + $0xd8] sm:$0xf]
    %v91 = vld [vmem:[%s1 + $0xdc] sm:$0xf]
    %v92 = vld [vmem:[%s1 + $0xe0] sm:$0xf]
    %v93 = vld [vmem:[%s1 + $0xe4] sm:$0xf]
    %v94 = vld [vmem:[%s1 + $0xe8] sm:$0xf]
    %v95 = vld [vmem:[%s1 + $0xec] sm:$0xf]
    %v96 = vld [vmem:[%s1 + $0xf0] sm:$0xf]
    %v97 = vld [vmem:[%s1 + $0xf4] sm:$0xf]
    %v98 = vld [vmem:[%s1 + $0xf8] sm:$0xf]
    %v99 = vld [vmem:[%s1 + $0xfc] sm:$0xf]
    %v100 = vld [vmem:[%s2] sm:$0x1]
    %v102 = vlaneseq
    %v103 = vshrl.u32 %v102, 7
    %v104 = vsub.s32 0, %v103
    %v105 = vrot.slane %v100, %v104
    %v111 = vunpack.c.l.b16 %v32
    %v112 = vunpack.c.h.b16 %v32
    %v113 = vunpack.c.l.b16 %v33
    %v114 = vunpack.c.h.b16 %v33
    %v115 = vunpack.c.l.b16 %v34
    %v116 = vunpack.c.h.b16 %v34
    %v117 = vunpack.c.l.b16 %v35
    %v118 = vunpack.c.h.b16 %v35
    %v119 = vpack.c.b16 %v115, %v111
    %v120 = vpack.c.b16 %v116, %v112
    %v121 = vpack.c.b16 %v117, %v113
    %v122 = vpack.c.b16 %v118, %v114
    %v191 = vunpack.c.l.b16 %v36
    %v192 = vunpack.c.l.b16 %v37
    %v193 = vunpack.c.l.b16 %v38
    %v194 = vunpack.c.l.b16 %v39
    %v195 = vunpack.c.l.b16 %v40
    %v196 = vunpack.c.l.b16 %v41
    %v197 = vunpack.c.l.b16 %v42
    %v198 = vunpack.c.l.b16 %v43
    %v199 = vunpack.c.l.b16 %v44
    %v200 = vunpack.c.l.b16 %v45
    %v201 = vunpack.c.l.b16 %v46
    %v202 = vunpack.c.l.b16 %v47
    %v203 = vunpack.c.l.b16 %v48
    %v204 = vunpack.c.l.b16 %v49
    %v205 = vunpack.c.l.b16 %v50
    %v206 = vunpack.c.l.b16 %v51
    %v207 = vunpack.c.l.b16 %v52
    %v208 = vunpack.c.l.b16 %v53
    %v209 = vunpack.c.l.b16 %v54
    %v210 = vunpack.c.l.b16 %v55
    %v211 = vunpack.c.l.b16 %v56
    %v212 = vunpack.c.l.b16 %v57
    %v213 = vunpack.c.l.b16 %v58
    %v214 = vunpack.c.l.b16 %v59
    %v215 = vunpack.c.l.b16 %v60
    %v216 = vunpack.c.l.b16 %v61
    %v217 = vunpack.c.l.b16 %v62
    %v218 = vunpack.c.l.b16 %v63
    %v219 = vunpack.c.l.b16 %v64
    %v220 = vunpack.c.l.b16 %v65
    %v221 = vunpack.c.l.b16 %v66
    %v222 = vunpack.c.l.b16 %v67
    %v223 = vunpack.c.l.b16 %v68
    %v224 = vunpack.c.l.b16 %v69
    %v225 = vunpack.c.l.b16 %v70
    %v226 = vunpack.c.l.b16 %v71
    %v227 = vunpack.c.l.b16 %v72
    %v228 = vunpack.c.l.b16 %v73
    %v229 = vunpack.c.l.b16 %v74
    %v230 = vunpack.c.l.b16 %v75
    %v231 = vunpack.c.l.b16 %v76
    %v232 = vunpack.c.l.b16 %v77
    %v233 = vunpack.c.l.b16 %v78
    %v234 = vunpack.c.l.b16 %v79
    %v235 = vunpack.c.l.b16 %v80
    %v236 = vunpack.c.l.b16 %v81
    %v237 = vunpack.c.l.b16 %v82
    %v238 = vunpack.c.l.b16 %v83
    %v239 = vunpack.c.l.b16 %v84
    %v240 = vunpack.c.l.b16 %v85
    %v241 = vunpack.c.l.b16 %v86
    %v242 = vunpack.c.l.b16 %v87
    %v243 = vunpack.c.l.b16 %v88
    %v244 = vunpack.c.l.b16 %v89
    %v245 = vunpack.c.l.b16 %v90
    %v246 = vunpack.c.l.b16 %v91
    %v247 = vunpack.c.l.b16 %v92
    %v248 = vunpack.c.l.b16 %v93
    %v249 = vunpack.c.l.b16 %v94
    %v250 = vunpack.c.l.b16 %v95
    %v251 = vunpack.c.l.b16 %v96
    %v252 = vunpack.c.l.b16 %v97
    %v253 = vunpack.c.l.b16 %v98
    %v254 = vunpack.c.l.b16 %v99
    %v255 = vpack.c.b16 %v192, %v191
    %v256 = vpack.c.b16 %v194, %v193
    %v257 = vpack.c.b16 %v196, %v195
    %v258 = vpack.c.b16 %v198, %v197
    %v259 = vpack.c.b16 %v200, %v199
    %v260 = vpack.c.b16 %v202, %v201
    %v261 = vpack.c.b16 %v204, %v203
    %v262 = vpack.c.b16 %v206, %v205
    %v263 = vpack.c.b16 %v208, %v207
    %v264 = vpack.c.b16 %v210, %v209
    %v265 = vpack.c.b16 %v212, %v211
    %v266 = vpack.c.b16 %v214, %v213
    %v267 = vpack.c.b16 %v216, %v215
    %v268 = vpack.c.b16 %v218, %v217
    %v269 = vpack.c.b16 %v220, %v219
    %v270 = vpack.c.b16 %v222, %v221
    %v271 = vpack.c.b16 %v224, %v223
    %v272 = vpack.c.b16 %v226, %v225
    %v273 = vpack.c.b16 %v228, %v227
    %v274 = vpack.c.b16 %v230, %v229
    %v275 = vpack.c.b16 %v232, %v231
    %v276 = vpack.c.b16 %v234, %v233
    %v277 = vpack.c.b16 %v236, %v235
    %v278 = vpack.c.b16 %v238, %v237
    %v279 = vpack.c.b16 %v240, %v239
    %v280 = vpack.c.b16 %v242, %v241
    %v281 = vpack.c.b16 %v244, %v243
    %v282 = vpack.c.b16 %v246, %v245
    %v283 = vpack.c.b16 %v248, %v247
    %v284 = vpack.c.b16 %v250, %v249
    %v285 = vpack.c.b16 %v252, %v251
    %v286 = vpack.c.b16 %v254, %v253
    %319 = vmatprep.subr.bf16.mxu0 0
    %320 = vmatpush1.bf16.msra.mxu0 %v262
    %321 = vmatprep.subr.bf16.mxu0 0
    %322 = vmatpush1.bf16.msra.mxu0 %v261
    %323 = vmatprep.subr.bf16.mxu0 0
    %324 = vmatpush1.bf16.msra.mxu0 %v260
    %325 = vmatprep.subr.bf16.mxu0 0
    %326 = vmatpush1.bf16.msra.mxu0 %v259
    %327 = vmatprep.subr.bf16.mxu0 0
    %328 = vmatpush1.bf16.msra.mxu0 %v258
    %329 = vmatprep.subr.bf16.mxu0 0
    %330 = vmatpush1.bf16.msra.mxu0 %v257
    %331 = vmatprep.subr.bf16.mxu0 0
    %332 = vmatpush1.bf16.msra.mxu0 %v256
    %333 = vmatprep.subr.bf16.mxu0 0
    %334 = vmatpush1.bf16.msra.mxu0 %v255
    %335 = vmatprep.subr.bf16.mxu0 0
    %336 = vmatpush2.bf16.msra.mxu0 %v270
    %337 = vmatprep.subr.bf16.mxu0 0
    %338 = vmatpush2.bf16.msra.mxu0 %v269
    %339 = vmatprep.subr.bf16.mxu0 0
    %340 = vmatpush2.bf16.msra.mxu0 %v268
    %341 = vmatprep.subr.bf16.mxu0 0
    %342 = vmatpush2.bf16.msra.mxu0 %v267
    %343 = vmatprep.subr.bf16.mxu0 0
    %344 = vmatpush2.bf16.msra.mxu0 %v266
    %345 = vmatprep.subr.bf16.mxu0 0
    %346 = vmatpush2.bf16.msra.mxu0 %v265
    %347 = vmatprep.subr.bf16.mxu0 0
    %348 = vmatpush2.bf16.msra.mxu0 %v264
    %349 = vmatprep.subr.bf16.mxu0 0
    %350 = vmatpush2.bf16.msra.mxu0 %v263
    %351 = vmatprep.mubr.bf16.mxu0 %v120
    %352 = vmatmul.mubr.bf16.gmra.mxu0 %v119
    %v353 = vpop.f32.mrf.mxu0
    %v354 = vadd.f32 %v105, %v353
    %v355 = vpop.f32.mrf.mxu0
    %v356 = vpop.f32.mrf.mxu0
    %v357 = vadd.f32 %v105, %v356
    %v358 = vpop.f32.mrf.mxu0
    %359 = vdwg.mxu0
    %360 = vmatprep.subr.bf16.mxu0 0
    %361 = vmatpush1.bf16.msra.mxu0 %v278
    %362 = vmatprep.subr.bf16.mxu0 0
    %363 = vmatpush1.bf16.msra.mxu0 %v277
    %364 = vmatprep.subr.bf16.mxu0 0
    %365 = vmatpush1.bf16.msra.mxu0 %v276
    %366 = vmatprep.subr.bf16.mxu0 0
    %367 = vmatpush1.bf16.msra.mxu0 %v275
    %368 = vmatprep.subr.bf16.mxu0 0
    %369 = vmatpush1.bf16.msra.mxu0 %v274
    %370 = vmatprep.subr.bf16.mxu0 0
    %371 = vmatpush1.bf16.msra.mxu0 %v273
    %372 = vmatprep.subr.bf16.mxu0 0
    %373 = vmatpush1.bf16.msra.mxu0 %v272
    %374 = vmatprep.subr.bf16.mxu0 0
    %375 = vmatpush1.bf16.msra.mxu0 %v271
    %376 = vmatprep.subr.bf16.mxu0 0
    %377 = vmatpush2.bf16.msra.mxu0 %v286
    %378 = vmatprep.subr.bf16.mxu0 0
    %379 = vmatpush2.bf16.msra.mxu0 %v285
    %380 = vmatprep.subr.bf16.mxu0 0
    %381 = vmatpush2.bf16.msra.mxu0 %v284
    %382 = vmatprep.subr.bf16.mxu0 0
    %383 = vmatpush2.bf16.msra.mxu0 %v283
    %384 = vmatprep.subr.bf16.mxu0 0
    %385 = vmatpush2.bf16.msra.mxu0 %v282
    %386 = vmatprep.subr.bf16.mxu0 0
    %387 = vmatpush2.bf16.msra.mxu0 %v281
    %388 = vmatprep.subr.bf16.mxu0 0
    %389 = vmatpush2.bf16.msra.mxu0 %v280
    %390 = vmatprep.subr.bf16.mxu0 0
    %391 = vmatpush2.bf16.msra.mxu0 %v279
    %392 = vmatprep.mubr.bf16.mxu0 %v122
    %393 = vmatmul.mubr.bf16.gmra.mxu0 %v121
    %v394 = vpop.f32.mrf.mxu0
    %v395 = vadd.f32 %v354, %v394
    %v396 = vpop.f32.mrf.mxu0
    %v397 = vpop.f32.mrf.mxu0
    %v398 = vadd.f32 %v357, %v397
    %v399 = vpop.f32.mrf.mxu0
    %400 = vdwg.mxu0
    %vm401 = vcmp.ge.f32.partialorder %v395, 0.0
    %vm402 = vcmp.ge.f32.partialorder %v398, 0.0
    %v403 = vmul.f32 %v395, 0.2
    %v404 = vmul.f32 %v398, 0.2
    %v405 = vsel %vm401, %v395, %v403
    %v406 = vsel %vm402, %v398, %v404
    %v407 = vld [vmem:[%s3] sm:$0xff]
    %v408 = vld [vmem:[%s3 + $0x8] sm:$0xff]
    %vm409 = vcmask 130048
    %v411 = vsel %vm409, %v405, 0
    %v414 = vsel %vm409, %v406, 0
    %416 = vmatprep.subr.mxu0 0.0
    %417 = vmatpush1.msra.mxu0 0.0
    %418 = vmatprep.subr.mxu0 0.0
    %419 = vmatpush1.msra.mxu0 0.0
    %420 = vmatprep.subr.mxu0 0.0
    %421 = vmatpush1.msra.mxu0 0.0
    %422 = vmatprep.subr.mxu0 0.0
    %423 = vmatpush1.msra.mxu0 0.0
    %424 = vmatprep.subr.mxu0 0.0
    %425 = vmatpush1.msra.mxu0 0.0
    %426 = vmatprep.subr.mxu0 0.0
    %427 = vmatpush1.msra.mxu0 0.0
    %428 = vmatprep.subr.mxu0 0.0
    %429 = vmatpush1.msra.mxu0 0.0
    %430 = vmatprep.subr.mxu0 0.0
    %431 = vmatpush1.msra.mxu0 0.0
    %432 = vmatprep.subr.mxu0 0.0
    %433 = vmatpush1.msra.mxu0 0.0
    %434 = vmatprep.subr.mxu0 0.0
    %435 = vmatpush1.msra.mxu0 0.0
    %436 = vmatprep.subr.mxu0 0.0
    %437 = vmatpush1.msra.mxu0 0.0
    %438 = vmatprep.subr.mxu0 0.0
    %439 = vmatpush1.msra.mxu0 0.0
    %440 = vmatprep.subr.mxu0 0.0
    %441 = vmatpush1.msra.mxu0 0.0
    %442 = vmatprep.subr.mxu0 0.0
    %443 = vmatpush1.msra.mxu0 0.0
    %444 = vmatprep.subr.mxu0 0.0
    %445 = vmatpush1.msra.mxu0 %v408
    %446 = vmatprep.subr.mxu0 0.0
    %447 = vmatpush1.msra.mxu0 %v407
    %448 = vmatprep.subr.mxu0 0.0
    %449 = vmatpush2.msra.mxu0 0.0
    %450 = vmatprep.subr.mxu0 0.0
    %451 = vmatpush2.msra.mxu0 0.0
    %452 = vmatprep.subr.mxu0 0.0
    %453 = vmatpush2.msra.mxu0 0.0
    %454 = vmatprep.subr.mxu0 0.0
    %455 = vmatpush2.msra.mxu0 0.0
    %456 = vmatprep.subr.mxu0 0.0
    %457 = vmatpush2.msra.mxu0 0.0
    %458 = vmatprep.subr.mxu0 0.0
    %459 = vmatpush2.msra.mxu0 0.0
    %460 = vmatprep.subr.mxu0 0.0
    %461 = vmatpush2.msra.mxu0 0.0
    %462 = vmatprep.subr.mxu0 0.0
    %463 = vmatpush2.msra.mxu0 0.0
    %464 = vmatprep.subr.mxu0 0.0
    %465 = vmatpush2.msra.mxu0 0.0
    %466 = vmatprep.subr.mxu0 0.0
    %467 = vmatpush2.msra.mxu0 0.0
    %468 = vmatprep.subr.mxu0 0.0
    %469 = vmatpush2.msra.mxu0 0.0
    %470 = vmatprep.subr.mxu0 0.0
    %471 = vmatpush2.msra.mxu0 0.0
    %472 = vmatprep.subr.mxu0 0.0
    %473 = vmatpush2.msra.mxu0 0.0
    %474 = vmatprep.subr.mxu0 0.0
    %475 = vmatpush2.msra.mxu0 0.0
    %476 = vmatprep.subr.mxu0 0.0
    %477 = vmatpush2.msra.mxu0 0.0
    %478 = vmatprep.subr.mxu0 0.0
    %479 = vmatpush2.msra.mxu0 0.0
    %480 = vmatprep.mubr.f32.mxu0 0.0
    %481 = vmatmul.mubr.f32.gmra.mxu0 %v411
    %v482 = vpop.f32.mrf.mxu0
    %v483 = vadd.f32 0.0, %v482
    %v484 = vpop.f32.mrf.mxu0
    %485 = vmatprep.mubr.f32.mxu0 0.0
    %486 = vmatmul.mubr.f32.gmra.mxu0 %v414
    %v487 = vpop.f32.mrf.mxu0
    %v488 = vadd.f32 0.0, %v487
    %v489 = vpop.f32.mrf.mxu0
    %490 = vdwg.mxu0
    %v491 = vld [vmem:[%s4] sm:$0xff]
    %v492 = vld [vmem:[%s4 + $0x8] sm:$0xff]
    %493 = vmatprep.subr.mxu0 0.0
    %494 = vmatpush1.msra.mxu0 0.0
    %495 = vmatprep.subr.mxu0 0.0
    %496 = vmatpush1.msra.mxu0 0.0
    %497 = vmatprep.subr.mxu0 0.0
    %498 = vmatpush1.msra.mxu0 0.0
    %499 = vmatprep.subr.mxu0 0.0
    %500 = vmatpush1.msra.mxu0 0.0
    %501 = vmatprep.subr.mxu0 0.0
    %502 = vmatpush1.msra.mxu0 0.0
    %503 = vmatprep.subr.mxu0 0.0
    %504 = vmatpush1.msra.mxu0 0.0
    %505 = vmatprep.subr.mxu0 0.0
    %506 = vmatpush1.msra.mxu0 0.0
    %507 = vmatprep.subr.mxu0 0.0
    %508 = vmatpush1.msra.mxu0 0.0
    %509 = vmatprep.subr.mxu0 0.0
    %510 = vmatpush1.msra.mxu0 0.0
    %511 = vmatprep.subr.mxu0 0.0
    %512 = vmatpush1.msra.mxu0 0.0
    %513 = vmatprep.subr.mxu0 0.0
    %514 = vmatpush1.msra.mxu0 0.0
    %515 = vmatprep.subr.mxu0 0.0
    %516 = vmatpush1.msra.mxu0 0.0
    %517 = vmatprep.subr.mxu0 0.0
    %518 = vmatpush1.msra.mxu0 0.0
    %519 = vmatprep.subr.mxu0 0.0
    %520 = vmatpush1.msra.mxu0 0.0
    %521 = vmatprep.subr.mxu0 0.0
    %522 = vmatpush1.msra.mxu0 %v492
    %523 = vmatprep.subr.mxu0 0.0
    %524 = vmatpush1.msra.mxu0 %v491
    %525 = vmatprep.subr.mxu0 0.0
    %526 = vmatpush2.msra.mxu0 0.0
    %527 = vmatprep.subr.mxu0 0.0
    %528 = vmatpush2.msra.mxu0 0.0
    %529 = vmatprep.subr.mxu0 0.0
    %530 = vmatpush2.msra.mxu0 0.0
    %531 = vmatprep.subr.mxu0 0.0
    %532 = vmatpush2.msra.mxu0 0.0
    %533 = vmatprep.subr.mxu0 0.0
    %534 = vmatpush2.msra.mxu0 0.0
    %535 = vmatprep.subr.mxu0 0.0
    %536 = vmatpush2.msra.mxu0 0.0
    %537 = vmatprep.subr.mxu0 0.0
    %538 = vmatpush2.msra.mxu0 0.0
    %539 = vmatprep.subr.mxu0 0.0
    %540 = vmatpush2.msra.mxu0 0.0
    %541 = vmatprep.subr.mxu0 0.0
    %542 = vmatpush2.msra.mxu0 0.0
    %543 = vmatprep.subr.mxu0 0.0
    %544 = vmatpush2.msra.mxu0 0.0
    %545 = vmatprep.subr.mxu0 0.0
    %546 = vmatpush2.msra.mxu0 0.0
    %547 = vmatprep.subr.mxu0 0.0
    %548 = vmatpush2.msra.mxu0 0.0
    %549 = vmatprep.subr.mxu0 0.0
    %550 = vmatpush2.msra.mxu0 0.0
    %551 = vmatprep.subr.mxu0 0.0
    %552 = vmatpush2.msra.mxu0 0.0
    %553 = vmatprep.subr.mxu0 0.0
    %554 = vmatpush2.msra.mxu0 0.0
    %555 = vmatprep.subr.mxu0 0.0
    %556 = vmatpush2.msra.mxu0 0.0
    %557 = vmatprep.mubr.f32.mxu0 0.0
    %558 = vmatmul.mubr.f32.gmra.mxu0 %v411
    %v559 = vpop.f32.mrf.mxu0
    %v560 = vadd.f32 0.0, %v559
    %v561 = vpop.f32.mrf.mxu0
    %562 = vmatprep.mubr.f32.mxu0 0.0
    %563 = vmatmul.mubr.f32.gmra.mxu0 %v414
    %v564 = vpop.f32.mrf.mxu0
    %v565 = vadd.f32 0.0, %v564
    %v566 = vpop.f32.mrf.mxu0
    %567 = vdwg.mxu0
    %v568 = vld [vmem:[%s5] sm:$0xff]
    %v569 = vld [vmem:[%s5 + $0x8] sm:$0xff]
    %570 = vmatprep.subr.mxu0 0.0
    %571 = vmatpush1.msra.mxu0 0.0
    %572 = vmatprep.subr.mxu0 0.0
    %573 = vmatpush1.msra.mxu0 0.0
    %574 = vmatprep.subr.mxu0 0.0
    %575 = vmatpush1.msra.mxu0 0.0
    %576 = vmatprep.subr.mxu0 0.0
    %577 = vmatpush1.msra.mxu0 0.0
    %578 = vmatprep.subr.mxu0 0.0
    %579 = vmatpush1.msra.mxu0 0.0
    %580 = vmatprep.subr.mxu0 0.0
    %581 = vmatpush1.msra.mxu0 0.0
    %582 = vmatprep.subr.mxu0 0.0
    %583 = vmatpush1.msra.mxu0 0.0
    %584 = vmatprep.subr.mxu0 0.0
    %585 = vmatpush1.msra.mxu0 0.0
    %586 = vmatprep.subr.mxu0 0.0
    %587 = vmatpush1.msra.mxu0 0.0
    %588 = vmatprep.subr.mxu0 0.0
    %589 = vmatpush1.msra.mxu0 0.0
    %590 = vmatprep.subr.mxu0 0.0
    %591 = vmatpush1.msra.mxu0 0.0
    %592 = vmatprep.subr.mxu0 0.0
    %593 = vmatpush1.msra.mxu0 0.0
    %594 = vmatprep.subr.mxu0 0.0
    %595 = vmatpush1.msra.mxu0 0.0
    %596 = vmatprep.subr.mxu0 0.0
    %597 = vmatpush1.msra.mxu0 0.0
    %598 = vmatprep.subr.mxu0 0.0
    %599 = vmatpush1.msra.mxu0 %v569
    %600 = vmatprep.subr.mxu0 0.0
    %601 = vmatpush1.msra.mxu0 %v568
    %602 = vmatprep.subr.mxu0 0.0
    %603 = vmatpush2.msra.mxu0 0.0
    %604 = vmatprep.subr.mxu0 0.0
    %605 = vmatpush2.msra.mxu0 0.0
    %606 = vmatprep.subr.mxu0 0.0
    %607 = vmatpush2.msra.mxu0 0.0
    %608 = vmatprep.subr.mxu0 0.0
    %609 = vmatpush2.msra.mxu0 0.0
    %610 = vmatprep.subr.mxu0 0.0
    %611 = vmatpush2.msra.mxu0 0.0
    %612 = vmatprep.subr.mxu0 0.0
    %613 = vmatpush2.msra.mxu0 0.0
    %614 = vmatprep.subr.mxu0 0.0
    %615 = vmatpush2.msra.mxu0 0.0
    %616 = vmatprep.subr.mxu0 0.0
    %617 = vmatpush2.msra.mxu0 0.0
    %618 = vmatprep.subr.mxu0 0.0
    %619 = vmatpush2.msra.mxu0 0.0
    %620 = vmatprep.subr.mxu0 0.0
    %621 = vmatpush2.msra.mxu0 0.0
    %622 = vmatprep.subr.mxu0 0.0
    %623 = vmatpush2.msra.mxu0 0.0
    %624 = vmatprep.subr.mxu0 0.0
    %625 = vmatpush2.msra.mxu0 0.0
    %626 = vmatprep.subr.mxu0 0.0
    %627 = vmatpush2.msra.mxu0 0.0
    %628 = vmatprep.subr.mxu0 0.0
    %629 = vmatpush2.msra.mxu0 0.0
    %630 = vmatprep.subr.mxu0 0.0
    %631 = vmatpush2.msra.mxu0 0.0
    %632 = vmatprep.subr.mxu0 0.0
    %633 = vmatpush2.msra.mxu0 0.0
    %634 = vmatprep.mubr.f32.mxu0 0.0
    %635 = vmatmul.mubr.f32.gmra.mxu0 %v411
    %v636 = vpop.f32.mrf.mxu0
    %v637 = vadd.f32 0.0, %v636
    %v638 = vpop.f32.mrf.mxu0
    %639 = vmatprep.mubr.f32.mxu0 0.0
    %640 = vmatmul.mubr.f32.gmra.mxu0 %v414
    %v641 = vpop.f32.mrf.mxu0
    %v642 = vadd.f32 0.0, %v641
    %v643 = vpop.f32.mrf.mxu0
    %644 = vdwg.mxu0
    %v646 = vsel %vm409, %v483, 0
    %v649 = vsel %vm409, %v560, 0
    %651 = vmatprep.subr.mxu0 0.0
    %652 = vmatpush1.xpose.msra.mxu0 0.0
    %653 = vmatprep.subr.mxu0 0.0
    %654 = vmatpush1.xpose.msra.mxu0 0.0
    %655 = vmatprep.subr.mxu0 0.0
    %656 = vmatpush1.xpose.msra.mxu0 0.0
    %657 = vmatprep.subr.mxu0 0.0
    %658 = vmatpush1.xpose.msra.mxu0 0.0
    %659 = vmatprep.subr.mxu0 0.0
    %660 = vmatpush1.xpose.msra.mxu0 0.0
    %661 = vmatprep.subr.mxu0 0.0
    %662 = vmatpush1.xpose.msra.mxu0 0.0
    %663 = vmatprep.subr.mxu0 0.0
    %664 = vmatpush1.xpose.msra.mxu0 0.0
    %665 = vmatprep.subr.mxu0 0.0
    %666 = vmatpush1.xpose.msra.mxu0 0.0
    %667 = vmatprep.subr.mxu0 0.0
    %668 = vmatpush1.xpose.msra.mxu0 0.0
    %669 = vmatprep.subr.mxu0 0.0
    %670 = vmatpush1.xpose.msra.mxu0 0.0
    %671 = vmatprep.subr.mxu0 0.0
    %672 = vmatpush1.xpose.msra.mxu0 0.0
    %673 = vmatprep.subr.mxu0 0.0
    %674 = vmatpush1.xpose.msra.mxu0 0.0
    %675 = vmatprep.subr.mxu0 0.0
    %676 = vmatpush1.xpose.msra.mxu0 0.0
    %677 = vmatprep.subr.mxu0 0.0
    %678 = vmatpush1.xpose.msra.mxu0 0.0
    %679 = vmatprep.subr.mxu0 0.0
    %680 = vmatpush1.xpose.msra.mxu0 0.0
    %681 = vmatprep.subr.mxu0 0.0
    %682 = vmatpush1.xpose.msra.mxu0 %v649
    %683 = vmatprep.subr.mxu0 0.0
    %684 = vmatpush2.xpose.msra.mxu0 0.0
    %685 = vmatprep.subr.mxu0 0.0
    %686 = vmatpush2.xpose.msra.mxu0 0.0
    %687 = vmatprep.subr.mxu0 0.0
    %688 = vmatpush2.xpose.msra.mxu0 0.0
    %689 = vmatprep.subr.mxu0 0.0
    %690 = vmatpush2.xpose.msra.mxu0 0.0
    %691 = vmatprep.subr.mxu0 0.0
    %692 = vmatpush2.xpose.msra.mxu0 0.0
    %693 = vmatprep.subr.mxu0 0.0
    %694 = vmatpush2.xpose.msra.mxu0 0.0
    %695 = vmatprep.subr.mxu0 0.0
    %696 = vmatpush2.xpose.msra.mxu0 0.0
    %697 = vmatprep.subr.mxu0 0.0
    %698 = vmatpush2.xpose.msra.mxu0 0.0
    %699 = vmatprep.subr.mxu0 0.0
    %700 = vmatpush2.xpose.msra.mxu0 0.0
    %701 = vmatprep.subr.mxu0 0.0
    %702 = vmatpush2.xpose.msra.mxu0 0.0
    %703 = vmatprep.subr.mxu0 0.0
    %704 = vmatpush2.xpose.msra.mxu0 0.0
    %705 = vmatprep.subr.mxu0 0.0
    %706 = vmatpush2.xpose.msra.mxu0 0.0
    %707 = vmatprep.subr.mxu0 0.0
    %708 = vmatpush2.xpose.msra.mxu0 0.0
    %709 = vmatprep.subr.mxu0 0.0
    %710 = vmatpush2.xpose.msra.mxu0 0.0
    %711 = vmatprep.subr.mxu0 0.0
    %712 = vmatpush2.xpose.msra.mxu0 0.0
    %713 = vmatprep.subr.mxu0 0.0
    %714 = vmatpush2.xpose.msra.mxu0 0.0
    %715 = vmatprep.mubr.f32.mxu0 0.0
    %716 = vmatmul.mubr.f32.gmra.mxu0 %v646
    %v717 = vpop.f32.mrf.mxu0
    %v718 = vadd.f32 0.0, %v717
    %v719 = vpop.f32.mrf.mxu0
    %720 = vdwg.mxu0
    %v722 = vsel %vm409, %v488, 0
    %v725 = vsel %vm409, %v565, 0
    %727 = vmatprep.subr.mxu0 0.0
    %728 = vmatpush1.xpose.msra.mxu0 0.0
    %729 = vmatprep.subr.mxu0 0.0
    %730 = vmatpush1.xpose.msra.mxu0 0.0
    %731 = vmatprep.subr.mxu0 0.0
    %732 = vmatpush1.xpose.msra.mxu0 0.0
    %733 = vmatprep.subr.mxu0 0.0
    %734 = vmatpush1.xpose.msra.mxu0 0.0
    %735 = vmatprep.subr.mxu0 0.0
    %736 = vmatpush1.xpose.msra.mxu0 0.0
    %737 = vmatprep.subr.mxu0 0.0
    %738 = vmatpush1.xpose.msra.mxu0 0.0
    %739 = vmatprep.subr.mxu0 0.0
    %740 = vmatpush1.xpose.msra.mxu0 0.0
    %741 = vmatprep.subr.mxu0 0.0
    %742 = vmatpush1.xpose.msra.mxu0 0.0
    %743 = vmatprep.subr.mxu0 0.0
    %744 = vmatpush1.xpose.msra.mxu0 0.0
    %745 = vmatprep.subr.mxu0 0.0
    %746 = vmatpush1.xpose.msra.mxu0 0.0
    %747 = vmatprep.subr.mxu0 0.0
    %748 = vmatpush1.xpose.msra.mxu0 0.0
    %749 = vmatprep.subr.mxu0 0.0
    %750 = vmatpush1.xpose.msra.mxu0 0.0
    %751 = vmatprep.subr.mxu0 0.0
    %752 = vmatpush1.xpose.msra.mxu0 0.0
    %753 = vmatprep.subr.mxu0 0.0
    %754 = vmatpush1.xpose.msra.mxu0 0.0
    %755 = vmatprep.subr.mxu0 0.0
    %756 = vmatpush1.xpose.msra.mxu0 0.0
    %757 = vmatprep.subr.mxu0 0.0
    %758 = vmatpush1.xpose.msra.mxu0 %v725
    %759 = vmatprep.subr.mxu0 0.0
    %760 = vmatpush2.xpose.msra.mxu0 0.0
    %761 = vmatprep.subr.mxu0 0.0
    %762 = vmatpush2.xpose.msra.mxu0 0.0
    %763 = vmatprep.subr.mxu0 0.0
    %764 = vmatpush2.xpose.msra.mxu0 0.0
    %765 = vmatprep.subr.mxu0 0.0
    %766 = vmatpush2.xpose.msra.mxu0 0.0
    %767 = vmatprep.subr.mxu0 0.0
    %768 = vmatpush2.xpose.msra.mxu0 0.0
    %769 = vmatprep.subr.mxu0 0.0
    %770 = vmatpush2.xpose.msra.mxu0 0.0
    %771 = vmatprep.subr.mxu0 0.0
    %772 = vmatpush2.xpose.msra.mxu0 0.0
    %773 = vmatprep.subr.mxu0 0.0
    %774 = vmatpush2.xpose.msra.mxu0 0.0
    %775 = vmatprep.subr.mxu0 0.0
    %776 = vmatpush2.xpose.msra.mxu0 0.0
    %777 = vmatprep.subr.mxu0 0.0
    %778 = vmatpush2.xpose.msra.mxu0 0.0
    %779 = vmatprep.subr.mxu0 0.0
    %780 = vmatpush2.xpose.msra.mxu0 0.0
    %781 = vmatprep.subr.mxu0 0.0
    %782 = vmatpush2.xpose.msra.mxu0 0.0
    %783 = vmatprep.subr.mxu0 0.0
    %784 = vmatpush2.xpose.msra.mxu0 0.0
    %785 = vmatprep.subr.mxu0 0.0
    %786 = vmatpush2.xpose.msra.mxu0 0.0
    %787 = vmatprep.subr.mxu0 0.0
    %788 = vmatpush2.xpose.msra.mxu0 0.0
    %789 = vmatprep.subr.mxu0 0.0
    %790 = vmatpush2.xpose.msra.mxu0 0.0
    %791 = vmatprep.mubr.f32.mxu0 0.0
    %792 = vmatmul.mubr.f32.gmra.mxu0 %v722
    %v793 = vpop.f32.mrf.mxu0
    %v794 = vadd.f32 0.0, %v793
    %v795 = vpop.f32.mrf.mxu0
    %796 = vdwg.mxu0
    %vm797 = vcmask 64512
    %v798 = vsel %vm797, %v718, -inf
    %799 = vmax.xlane.f32.xlu0 %v798
    %v800 = vpop.xlane.xlu0 %799
    %v801 = vsel %vm797, %v794, -inf
    %802 = vmax.xlane.f32.xlu0 %v801
    %v803 = vpop.xlane.xlu0 %802
    %v804 = vsub.f32 %v718, %v800
    %v805 = vsub.f32 %v794, %v803
    %v806 = vmul.f32 %v804, 1.442695
    %v807 = vpow.pop %v806
    %v808 = vmul.f32 %v805, 1.442695
    %v809 = vpow.pop %v808
    %v810 = vsel %vm797, %v807, 0.0
    %811 = vadd.xlane.f32.xlu0 %v810
    %v812 = vpop.xlane.xlu0 %811
    %v813 = vsel %vm797, %v809, 0.0
    %814 = vadd.xlane.f32.xlu0 %v813
    %v815 = vpop.xlane.xlu0 %814
    %v816 = vrcp.pop %v812
    %v817 = vrcp.pop %v815
    %v818 = vmul.f32 %v807, %v816
    %v819 = vmul.f32 %v809, %v817
    %v821 = vsel %vm797, %v818, 0
    %823 = vmatprep.subr.mxu0 0.0
    %824 = vmatpush1.msra.mxu0 0.0
    %825 = vmatprep.subr.mxu0 0.0
    %826 = vmatpush1.msra.mxu0 0.0
    %827 = vmatprep.subr.mxu0 0.0
    %828 = vmatpush1.msra.mxu0 0.0
    %829 = vmatprep.subr.mxu0 0.0
    %830 = vmatpush1.msra.mxu0 0.0
    %831 = vmatprep.subr.mxu0 0.0
    %832 = vmatpush1.msra.mxu0 0.0
    %833 = vmatprep.subr.mxu0 0.0
    %834 = vmatpush1.msra.mxu0 0.0
    %835 = vmatprep.subr.mxu0 0.0
    %836 = vmatpush1.msra.mxu0 0.0
    %837 = vmatprep.subr.mxu0 0.0
    %838 = vmatpush1.msra.mxu0 0.0
    %839 = vmatprep.subr.mxu0 0.0
    %840 = vmatpush1.msra.mxu0 0.0
    %841 = vmatprep.subr.mxu0 0.0
    %842 = vmatpush1.msra.mxu0 0.0
    %843 = vmatprep.subr.mxu0 0.0
    %844 = vmatpush1.msra.mxu0 0.0
    %845 = vmatprep.subr.mxu0 0.0
    %846 = vmatpush1.msra.mxu0 0.0
    %847 = vmatprep.subr.mxu0 0.0
    %848 = vmatpush1.msra.mxu0 0.0
    %849 = vmatprep.subr.mxu0 0.0
    %850 = vmatpush1.msra.mxu0 0.0
    %851 = vmatprep.subr.mxu0 0.0
    %852 = vmatpush1.msra.mxu0 0.0
    %853 = vmatprep.subr.mxu0 0.0
    %854 = vmatpush1.msra.mxu0 %v637
    %855 = vmatprep.subr.mxu0 0.0
    %856 = vmatpush2.msra.mxu0 0.0
    %857 = vmatprep.subr.mxu0 0.0
    %858 = vmatpush2.msra.mxu0 0.0
    %859 = vmatprep.subr.mxu0 0.0
    %860 = vmatpush2.msra.mxu0 0.0
    %861 = vmatprep.subr.mxu0 0.0
    %862 = vmatpush2.msra.mxu0 0.0
    %863 = vmatprep.subr.mxu0 0.0
    %864 = vmatpush2.msra.mxu0 0.0
    %865 = vmatprep.subr.mxu0 0.0
    %866 = vmatpush2.msra.mxu0 0.0
    %867 = vmatprep.subr.mxu0 0.0
    %868 = vmatpush2.msra.mxu0 0.0
    %869 = vmatprep.subr.mxu0 0.0
    %870 = vmatpush2.msra.mxu0 0.0
    %871 = vmatprep.subr.mxu0 0.0
    %872 = vmatpush2.msra.mxu0 0.0
    %873 = vmatprep.subr.mxu0 0.0
    %874 = vmatpush2.msra.mxu0 0.0
    %875 = vmatprep.subr.mxu0 0.0
    %876 = vmatpush2.msra.mxu0 0.0
    %877 = vmatprep.subr.mxu0 0.0
    %878 = vmatpush2.msra.mxu0 0.0
    %879 = vmatprep.subr.mxu0 0.0
    %880 = vmatpush2.msra.mxu0 0.0
    %881 = vmatprep.subr.mxu0 0.0
    %882 = vmatpush2.msra.mxu0 0.0
    %883 = vmatprep.subr.mxu0 0.0
    %884 = vmatpush2.msra.mxu0 0.0
    %885 = vmatprep.subr.mxu0 0.0
    %886 = vmatpush2.msra.mxu0 0.0
    %887 = vmatprep.mubr.f32.mxu0 0.0
    %888 = vmatmul.mubr.f32.gmra.mxu0 %v821
    %v889 = vpop.f32.mrf.mxu0
    %v890 = vadd.f32 0.0, %v889
    %v891 = vpop.f32.mrf.mxu0
    %892 = vdwg.mxu0
    %v894 = vsel %vm797, %v819, 0
    %896 = vmatprep.subr.mxu0 0.0
    %897 = vmatpush1.msra.mxu0 0.0
    %898 = vmatprep.subr.mxu0 0.0
    %899 = vmatpush1.msra.mxu0 0.0
    %900 = vmatprep.subr.mxu0 0.0
    %901 = vmatpush1.msra.mxu0 0.0
    %902 = vmatprep.subr.mxu0 0.0
    %903 = vmatpush1.msra.mxu0 0.0
    %904 = vmatprep.subr.mxu0 0.0
    %905 = vmatpush1.msra.mxu0 0.0
    %906 = vmatprep.subr.mxu0 0.0
    %907 = vmatpush1.msra.mxu0 0.0
    %908 = vmatprep.subr.mxu0 0.0
    %909 = vmatpush1.msra.mxu0 0.0
    %910 = vmatprep.subr.mxu0 0.0
    %911 = vmatpush1.msra.mxu0 0.0
    %912 = vmatprep.subr.mxu0 0.0
    %913 = vmatpush1.msra.mxu0 0.0
    %914 = vmatprep.subr.mxu0 0.0
    %915 = vmatpush1.msra.mxu0 0.0
    %916 = vmatprep.subr.mxu0 0.0
    %917 = vmatpush1.msra.mxu0 0.0
    %918 = vmatprep.subr.mxu0 0.0
    %919 = vmatpush1.msra.mxu0 0.0
    %920 = vmatprep.subr.mxu0 0.0
    %921 = vmatpush1.msra.mxu0 0.0
    %922 = vmatprep.subr.mxu0 0.0
    %923 = vmatpush1.msra.mxu0 0.0
    %924 = vmatprep.subr.mxu0 0.0
    %925 = vmatpush1.msra.mxu0 0.0
    %926 = vmatprep.subr.mxu0 0.0
    %927 = vmatpush1.msra.mxu0 %v642
    %928 = vmatprep.subr.mxu0 0.0
    %929 = vmatpush2.msra.mxu0 0.0
    %930 = vmatprep.subr.mxu0 0.0
    %931 = vmatpush2.msra.mxu0 0.0
    %932 = vmatprep.subr.mxu0 0.0
    %933 = vmatpush2.msra.mxu0 0.0
    %934 = vmatprep.subr.mxu0 0.0
    %935 = vmatpush2.msra.mxu0 0.0
    %936 = vmatprep.subr.mxu0 0.0
    %937 = vmatpush2.msra.mxu0 0.0
    %938 = vmatprep.subr.mxu0 0.0
    %939 = vmatpush2.msra.mxu0 0.0
    %940 = vmatprep.subr.mxu0 0.0
    %941 = vmatpush2.msra.mxu0 0.0
    %942 = vmatprep.subr.mxu0 0.0
    %943 = vmatpush2.msra.mxu0 0.0
    %944 = vmatprep.subr.mxu0 0.0
    %945 = vmatpush2.msra.mxu0 0.0
    %946 = vmatprep.subr.mxu0 0.0
    %947 = vmatpush2.msra.mxu0 0.0
    %948 = vmatprep.subr.mxu0 0.0
    %949 = vmatpush2.msra.mxu0 0.0
    %950 = vmatprep.subr.mxu0 0.0
    %951 = vmatpush2.msra.mxu0 0.0
    %952 = vmatprep.subr.mxu0 0.0
    %953 = vmatpush2.msra.mxu0 0.0
    %954 = vmatprep.subr.mxu0 0.0
    %955 = vmatpush2.msra.mxu0 0.0
    %956 = vmatprep.subr.mxu0 0.0
    %957 = vmatpush2.msra.mxu0 0.0
    %958 = vmatprep.subr.mxu0 0.0
    %959 = vmatpush2.msra.mxu0 0.0
    %960 = vmatprep.mubr.f32.mxu0 0.0
    %961 = vmatmul.mubr.f32.gmra.mxu0 %v894
    %v962 = vpop.f32.mrf.mxu0
    %v963 = vadd.f32 0.0, %v962
    %v964 = vpop.f32.mrf.mxu0
    %965 = vdwg.mxu0
    %v966 = vadd.f32 %v405, %v890
    %v967 = vadd.f32 %v406, %v963
    %v968 = vld [vmem:[%s6] sm:$0x1]
    %v970 = vlaneseq
    %v971 = vshrl.u32 %v970, 7
    %v972 = vsub.s32 0, %v971
    %v973 = vrot.slane %v968, %v972
    %v975 = vmul.f32 %v966, %v973
    %v976 = vmul.f32 %v967, %v973
    %v977 = vsel %vm409, %v975, 0.0
    %978 = vadd.xlane.f32.xlu0 %v977
    %v979 = vpop.xlane.xlu0 %978
    %v980 = vsel %vm409, %v976, 0.0
    %981 = vadd.xlane.f32.xlu0 %v980
    %v982 = vpop.xlane.xlu0 %981
    %s983 = sld [smem:[#allocation2]]
    %v984 = vstv %s983
    %v985 = vadd.f32 %v979, %v984
    %v986 = vadd.f32 %v982, %v984
    %v989 = vlaneseq
    %v990 = vand.u32 %v989, 127
    %v991 = vlaneseq
    %v992 = vshrl.u32 %v991, 7
    %v993 = vsub.s32 %v990, %v992
    %v994 = vrot.slane %v985, %v993
    %v995 = vlaneseq
    %v996 = vshrl.u32 %v995, 7
    %v997 = vsub.s32 %v990, %v996
    %v998 = vrot.slane %v986, %v997
    %vm999 = vcmask 1041409
    %v1000 = vsel %vm999, %v998, %v994
    %vm1002 = vcmask 58368
    %1003 = vst.msk [vmem:[#allocation3] sm:$0x3] %vm1002, %v1000
    // Predicated region
    $region34: #{tpu_custom_call.1} parent=1 // pred_check
      _
    $region35: #{tpu_custom_call.1} parent=1 // pred_check_branch
      %1005 = sbr.rel (0) target = $region37
    $region36: #{tpu_custom_call.1} parent=1 // pred_region
      %s1007 = ssub.s32 32, 32
      %1008 = vsyncadd [#allocation4], %s1007
      %s1010 = sshll.u32 [#allocation3], 4
      %s1011 = int_to_ptr.vmem [resolvable:$true] %s1010
      %1013 = dma.vmem_to_hbm [thread:$0]  %s1011, 32, %s8, [#allocation4]
    $region37: #{tpu_custom_call.1} parent=1 // pred_fallthru
      _
    // Predicated region
    $region38: #{tpu_custom_call.1} parent=1 // pred_check
      _
    $region39: #{tpu_custom_call.1} parent=1 // pred_check_branch
      %1015 = sbr.rel (0) target = $region41
    $region40: #{tpu_custom_call.1} parent=1 // pred_region
      %1016 = dma.done [#allocation4], 32
    $region41: #{tpu_custom_call.1} parent=1 // pred_fallthru
      _
    %1017 = vsyncpa [#allocation4], 1

</llo_original>
